<compile_context>
chip_gen: v5e
topology: v5e:2x2
jax: 0.10.0
libtpu: 0.0.40
codegen_flags: <defaults>
</compile_context>

<pallas_src>
import functools

import jax
import jax.numpy as jnp
from jax import lax
from jax.experimental import pallas as pl
from jax.experimental.pallas import tpu as pltpu


def _round_up(x, m):
    return ((x + m - 1) // m) * m


def _pick_tile(dim, pref, align):
    """Largest tile (multiple of `align`, <= pref) that minimises padding of `dim`.

    If the align-rounded dim already fits under `pref`, the whole (rounded) dim
    becomes a single block (maximum reuse, zero extra padding).
    """
    da = _round_up(dim, align)
    if da <= pref:
        return da
    best_t, best_pad = align, _round_up(da, align)
    t = align
    while t <= pref:
        pad = _round_up(da, t)
        if pad < best_pad or (pad == best_pad and t > best_t):
            best_t, best_pad = t, pad
        t += align
    return best_t


def _linear_relu_kernel_f32out(x_ref, w_ref, b_ref, o_ref):
    """f32 output: accumulate directly into the resident output block.

    x_ref: (tm, tk) activations (f32 or bf16)
    w_ref: (tn, tk) weight in PyTorch (OUT, IN) layout (contract dim 1 vs 1)
    b_ref: (1,  tn) f32 bias
    o_ref: (tm, tn) f32 output, resident across the K grid axis (axis 2)
    """
    k = pl.program_id(2)

    @pl.when(k == 0)
    def _():
        o_ref[...] = jnp.broadcast_to(b_ref[...], o_ref.shape)

    o_ref[...] += lax.dot_general(
        x_ref[...],
        w_ref[...],
        dimension_numbers=(((1,), (1,)), ((), ())),
        preferred_element_type=jnp.float32,
    )

    @pl.when(k == pl.num_programs(2) - 1)
    def _():
        o_ref[...] = jnp.maximum(o_ref[...], 0.0)


def _linear_relu_kernel_acc(x_ref, w_ref, b_ref, o_ref, acc_ref):
    """Narrow-output (e.g. bf16) variant: f32 accumulator scratch, cast at end."""
    k = pl.program_id(2)

    @pl.when(k == 0)
    def _():
        acc_ref[...] = jnp.broadcast_to(b_ref[...], acc_ref.shape)

    acc_ref[...] += lax.dot_general(
        x_ref[...],
        w_ref[...],
        dimension_numbers=(((1,), (1,)), ((), ())),
        preferred_element_type=jnp.float32,
    )

    @pl.when(k == pl.num_programs(2) - 1)
    def _():
        o_ref[...] = jnp.maximum(acc_ref[...], 0.0).astype(o_ref.dtype)


@functools.partial(jax.jit, static_argnames=("compute_dtype", "tm", "tn", "tk"))
def linear_w_activation(x, weight, bias, *, compute_dtype=None, tm=None, tn=None,
                        tk=None):
    """y = ReLU(x @ weight.T + bias).

    x: (B, IN); weight: (OUT, IN) (PyTorch layout, NOT transposed); bias: (OUT,).
    compute_dtype: operand dtype fed to the MXU (e.g. jnp.bfloat16 for ~2x
      throughput with f32 accumulation); default = x.dtype (exact semantics).
      For repeated calls, pre-cast the weight to compute_dtype at init so the
      per-call cast/pad never touches HBM.
    """
    B, IN = x.shape
    OUT, IN_w = weight.shape
    assert IN_w == IN, (weight.shape, x.shape)

    out_dtype = jnp.dtype(x.dtype)
    cdt = jnp.dtype(compute_dtype) if compute_dtype is not None else out_dtype

    # bf16 packs 2 rows per sublane -> second-minor operand tile must be a
    # multiple of 16 (8 is enough for f32).
    sub = 16 if cdt == jnp.dtype(jnp.bfloat16) else 8

    # ---- padding-aware, reuse-oriented tile selection ----
    tn_auto = tn is None
    if tm is None:
        tm = _pick_tile(B, 1024, sub)     # full batch when it fits: W streamed once
    if tk is None:
        tk = _pick_tile(IN, 2048, 128)    # full K when it fits: K axis collapses
    if tn is None:
        tn = _pick_tile(OUT, 512, 128)

    Mp, Kp, Np = _round_up(B, tm), _round_up(IN, tk), _round_up(OUT, tn)

    # v7x has 2 TensorCores: make sure at least one "parallel" axis has >=2
    # blocks so both get work (harmless on single-TC v5e/v6e).
    if tn_auto and Mp // tm == 1 and Np // tn == 1 and Np >= 256:
        tn = _pick_tile(OUT, Np // 2, 128)
        Np = _round_up(OUT, tn)

    # ---- operand dtype + (conditional) padding ----
    xc = x.astype(cdt) if x.dtype != cdt else x
    wc = weight.astype(cdt) if weight.dtype != cdt else weight
    bf = bias.astype(jnp.float32).reshape(1, OUT)

    def pad2(a, r, c):
        pr, pc = r - a.shape[0], c - a.shape[1]
        if pr or pc:
            a = jnp.pad(a, ((0, pr), (0, pc)))  # zero K-pad is inert; rows/cols sliced off
        return a

    xp = pad2(xc, Mp, Kp)
    wp = pad2(wc, Np, Kp)                 # stays (OUT, IN) -- no transpose
    bp = pad2(bf, 1, Np)

    # ---- kernel / scratch selection ----
    use_acc = out_dtype != jnp.dtype(jnp.float32)
    kernel = _linear_relu_kernel_acc if use_acc else _linear_relu_kernel_f32out
    scratch = [pltpu.VMEM((tm, tn), jnp.float32)] if use_acc else []

    # ---- explicit VMEM budget (double-buffered operands + output + scratch) ----
    xb = jnp.dtype(cdt).itemsize
    ob = out_dtype.itemsize
    est = 2 * (tm * tk + tn * tk) * xb + 2 * tm * tn * ob + 2 * tn * 4
    if use_acc:
        est += tm * tn * 4
    vmem_limit = int(min(max(est + (8 << 20), 32 << 20), 100 << 20))

    grid = (Mp // tm, Np // tn, Kp // tk)

    out = pl.pallas_call(
        kernel,
        out_shape=jax.ShapeDtypeStruct((Mp, Np), out_dtype),
        grid_spec=pltpu.PrefetchScalarGridSpec(
            num_scalar_prefetch=0,
            grid=grid,
            in_specs=[
                pl.BlockSpec((tm, tk), lambda i, j, k: (i, k)),   # x tile
                pl.BlockSpec((tn, tk), lambda i, j, k: (j, k)),   # W tile (OUT, IN)
                pl.BlockSpec((1, tn), lambda i, j, k: (0, j)),    # bias tile
            ],
            out_specs=pl.BlockSpec((tm, tn), lambda i, j, k: (i, j)),
            scratch_shapes=scratch,
        ),
        compiler_params=pltpu.CompilerParams(
            dimension_semantics=("parallel", "parallel", "arbitrary"),
            vmem_limit_bytes=vmem_limit,
        ),
    )(xp, wp, bp)

    if (Mp, Np) != (B, OUT):
        out = out[:B, :OUT]
    return out


def init_params(key, in_features, out_features, dtype=jnp.float32):
    """Deterministic init matching nn.Linear shapes: W (OUT, IN), b (OUT,)."""
    kw, kb = jax.random.split(key)
    bound = 1.0 / jnp.sqrt(in_features)
    weight = jax.random.uniform(
        kw, (out_features, in_features), dtype, minval=-bound, maxval=bound
    )
    bias = jax.random.uniform(
        kb, (out_features,), dtype, minval=-bound, maxval=bound
    )
    return weight, bias


if __name__ == "__main__":
    key = jax.random.PRNGKey(0)
    kx, kp, k2 = jax.random.split(key, 3)

    # 1) Small shapes implied by the module (nn.Linear + ReLU on 2-D input),
    #    exact f32 path (accumulate directly into the f32 output block).
    batch, in_features, out_features = 8, 32, 64
    x = jax.random.normal(kx, (batch, in_features), jnp.float32)
    weight, bias = init_params(kp, in_features, out_features)
    y = linear_w_activation(x, weight, bias)
    jax.block_until_ready(y)
    y_ref = jnp.maximum(x @ weight.T + bias, 0.0)
    assert y.shape == (batch, out_features)
    assert jnp.allclose(y, y_ref, atol=1e-5, rtol=1e-5)

    # 2) Larger, non-tile-multiple shapes; bf16 operands + f32 accumulation
    #    (the main perf path), multi-block N grid, full-batch tm, collapsed K.
    kx2, kp2 = jax.random.split(k2)
    B2, IN2, OUT2 = 200, 384, 640
    x2 = jax.random.normal(kx2, (B2, IN2), jnp.float32)
    w2, b2 = init_params(kp2, IN2, OUT2)
    y2 = linear_w_activation(x2, w2, b2, compute_dtype=jnp.bfloat16)
    jax.block_until_ready(y2)
    y2_ref = jnp.maximum(x2 @ w2.T + b2, 0.0)
    assert y2.shape == (B2, OUT2)
    assert jnp.allclose(y2, y2_ref, atol=5e-2, rtol=5e-2)

    # 3) bf16 in / bf16 out path (exercises the f32-scratch accumulator kernel).
    x3 = x2.astype(jnp.bfloat16)
    w3 = w2.astype(jnp.bfloat16)
    y3 = linear_w_activation(x3, w3, b2)
    jax.block_until_ready(y3)
    y3_ref = jnp.maximum(
        x3.astype(jnp.float32) @ w3.astype(jnp.float32).T + b2, 0.0
    )
    assert y3.dtype == jnp.bfloat16 and y3.shape == (B2, OUT2)
    assert jnp.allclose(y3.astype(jnp.float32), y3_ref, atol=1e-1, rtol=5e-2)

    print("KERNEL_OK")
</pallas_src>

<mosaic_0001>
module attributes {stable_mosaic.version = 11 : i64} {
  func.func @_linear_relu_kernel_f32out(%arg0: i32, %arg1: i32, %arg2: i32, %arg3: memref<8x128xf32, #tpu.memory_space<vmem>>, %arg4: memref<128x128xf32, #tpu.memory_space<vmem>>, %arg5: memref<1x128xf32, #tpu.memory_space<vmem>>, %arg6: memref<8x128xf32, #tpu.memory_space<vmem>>) attributes {dimension_semantics = [#tpu.dimension_semantics<parallel>, #tpu.dimension_semantics<parallel>, #tpu.dimension_semantics<arbitrary>], iteration_bounds = array<i64: 1, 1, 1>, scalar_prefetch = 0 : i64, scratch_operands = 0 : i64, tpu.core_type = #tpu.core_type<tc>, window_params = [{transform_indices = @transform_0, window_bounds = array<i64: 8, 128>}, {transform_indices = @transform_1, window_bounds = array<i64: 128, 128>}, {transform_indices = @transform_2, window_bounds = array<i64: 1, 128>}, {transform_indices = @transform_3, window_bounds = array<i64: 8, 128>}]} {
    %c0_i32 = arith.constant 0 : i32
    %0 = arith.cmpi eq, %arg2, %c0_i32 : i32
    %1 = arith.extui %0 : i1 to i32
    %c0_i32_0 = arith.constant 0 : i32
    %2 = arith.cmpi ne, %1, %c0_i32_0 : i32
    scf.if %2 {
      %c0_10 = arith.constant 0 : index
      %c0_11 = arith.constant 0 : index
      %12 = vector.load %arg5[%c0_10, %c0_11] : memref<1x128xf32, #tpu.memory_space<vmem>>, vector<1x128xf32>
      %13 = vector.shape_cast %12 : vector<1x128xf32> to vector<1x128xf32>
      %14 = vector.broadcast %13 : vector<1x128xf32> to vector<8x128xf32>
      %c0_12 = arith.constant 0 : index
      %c0_13 = arith.constant 0 : index
      %15 = vector.load %arg6[%c0_12, %c0_13] : memref<8x128xf32, #tpu.memory_space<vmem>>, vector<8x128xf32>
      tpu.vector_store %arg6[%c0_12, %c0_13], %14 {strides = array<i32>} : memref<8x128xf32, #tpu.memory_space<vmem>>, vector<8x128xf32>,
    } else {
    }
    %c0 = arith.constant 0 : index
    %c0_1 = arith.constant 0 : index
    %3 = vector.load %arg6[%c0, %c0_1] : memref<8x128xf32, #tpu.memory_space<vmem>>, vector<8x128xf32>
    %c0_2 = arith.constant 0 : index
    %c0_3 = arith.constant 0 : index
    %4 = vector.load %arg3[%c0_2, %c0_3] : memref<8x128xf32, #tpu.memory_space<vmem>>, vector<8x128xf32>
    %c0_4 = arith.constant 0 : index
    %c0_5 = arith.constant 0 : index
    %5 = vector.load %arg4[%c0_4, %c0_5] : memref<128x128xf32, #tpu.memory_space<vmem>>, vector<128x128xf32>
    %cst = arith.constant dense<0.000000e+00> : vector<8x128xf32>
    %6 = tpu.matmul %4, %5, %cst {dimension_numbers = #tpu.dot_dimension_numbers<[1], [1], [0], [0], [0, 0, 1, 0], [], []>} : vector<8x128xf32>, vector<128x128xf32>, vector<8x128xf32> -> vector<8x128xf32>
    %7 = arith.addf %3, %6 : vector<8x128xf32>
    %c0_6 = arith.constant 0 : index
    %c0_7 = arith.constant 0 : index
    %8 = vector.load %arg6[%c0_6, %c0_7] : memref<8x128xf32, #tpu.memory_space<vmem>>, vector<8x128xf32>
    tpu.vector_store %arg6[%c0_6, %c0_7], %7 {strides = array<i32>} : memref<8x128xf32, #tpu.memory_space<vmem>>, vector<8x128xf32>,
    %c0_i32_8 = arith.constant 0 : i32
    %9 = arith.cmpi eq, %arg2, %c0_i32_8 : i32
    %10 = arith.extui %9 : i1 to i32
    %c0_i32_9 = arith.constant 0 : i32
    %11 = arith.cmpi ne, %10, %c0_i32_9 : i32
    scf.if %11 {
      %c0_10 = arith.constant 0 : index
      %c0_11 = arith.constant 0 : index
      %12 = vector.load %arg6[%c0_10, %c0_11] : memref<8x128xf32, #tpu.memory_space<vmem>>, vector<8x128xf32>
      %cst_12 = arith.constant 0.000000e+00 : f32
      %13 = vector.broadcast %cst_12 : f32 to vector<8x128xf32>
      %14 = arith.maximumf %12, %13 : vector<8x128xf32>
      %c0_13 = arith.constant 0 : index
      %c0_14 = arith.constant 0 : index
      %15 = vector.load %arg6[%c0_13, %c0_14] : memref<8x128xf32, #tpu.memory_space<vmem>>, vector<8x128xf32>
      tpu.vector_store %arg6[%c0_13, %c0_14], %14 {strides = array<i32>} : memref<8x128xf32, #tpu.memory_space<vmem>>, vector<8x128xf32>,
    } else {
    }
    return
  }
  func.func @transform_0(%arg0: i32, %arg1: i32, %arg2: i32) -> (i32, i32) {
    %c0_i32 = arith.constant 0 : i32
    return %arg0, %arg2 : i32, i32
  }
  func.func @transform_1(%arg0: i32, %arg1: i32, %arg2: i32) -> (i32, i32) {
    %c0_i32 = arith.constant 0 : i32
    return %arg1, %arg2 : i32, i32
  }
  func.func @transform_2(%arg0: i32, %arg1: i32, %arg2: i32) -> (i32, i32) {
    %c0_i32 = arith.constant 0 : i32
    %c0_i32_0 = arith.constant 0 : i32
    return %c0_i32, %arg1 : i32, i32
  }
  func.func @transform_3(%arg0: i32, %arg1: i32, %arg2: i32) -> (i32, i32) {
    %c0_i32 = arith.constant 0 : i32
    return %arg0, %arg1 : i32, i32
  }
}

</mosaic_0001>

<llo_original>
// kernel: linear_w_activation.1
$region0: #{linear_w_activation.1}
  #allocation0 [shape = 'u32[]', space=smem, size = 0x4, offset = 0x4, fixed_abs, tag = 'smem constant byte address 0x4 - core index']
  #allocation1 [shape = 'u32[72,128]{1,0:T(1,128)}', space=vmem, size = 0x9000, scoped, tag = 'internal scratch']
  %s0 = inlined_call_operand.vmem [shape: f32[8,128], index: 0, kind: input, shape index: {}]
  %s1 = inlined_call_operand.vmem [shape: f32[128,128], index: 1, kind: input, shape index: {}]
  %s2 = inlined_call_operand.vmem [shape: f32[1,128], index: 2, kind: input, shape index: {}]
  %s3 = inlined_call_operand.hbm [shape: f32[8,128], index: 3, kind: output, shape index: {}]
  %s4 = sld [smem:[#allocation0]]
  $region30: #{linear_w_activation.1} parent=0
    _
  %s6 = ssub.s32 1, %s4
  %s7 = scalar_select 0, %s6, %s4
  $region1: #{linear_w_activation.1} parent=0
    #allocation2 [shape = 'u8[4096]{0}', space=vmem, size = 0x1000, scoped, tag = 'output window, operand 0, single buffered']
    #allocation3 [shape = 's32[1]{0}', space=sflag, size = 0x4, scoped, tag = 'scoped memory for linear_w_activation.1']
    %8 = vsyncpa [#allocation3], 0
    // Predicated region
    $region2: #{linear_w_activation.1} parent=1 // pred_check
      _
    $region3: #{linear_w_activation.1} parent=1 // pred_check_branch
      %10 = sbr.rel (0) target = $region5
    $region4: #{linear_w_activation.1} parent=1 // pred_region
      _
    $region5: #{linear_w_activation.1} parent=1 // pred_fallthru
      _
    // Predicated region
    $region6: #{linear_w_activation.1} parent=1 // pred_check
      _
    $region7: #{linear_w_activation.1} parent=1 // pred_check_branch
      %12 = sbr.rel (0) target = $region9
    $region8: #{linear_w_activation.1} parent=1 // pred_region
      _
    $region9: #{linear_w_activation.1} parent=1 // pred_fallthru
      _
    // Predicated region
    $region10: #{linear_w_activation.1} parent=1 // pred_check
      _
    $region11: #{linear_w_activation.1} parent=1 // pred_check_branch
      %14 = sbr.rel (0) target = $region13
    $region12: #{linear_w_activation.1} parent=1 // pred_region
      _
    $region13: #{linear_w_activation.1} parent=1 // pred_fallthru
      _
    %p15 = scmp.eq.s32.totalorder 0, 0
    // Predicated region
    $region14: #{linear_w_activation.1} parent=1 // pred_check
      %p16 = pneg %p15
    $region15: #{linear_w_activation.1} parent=1 // pred_check_branch
      %18 = sbr.rel (%p16) target = $region17
    $region16: #{linear_w_activation.1} parent=1 // pred_region
      %v19 = vld [vmem:[%s2] sm:$0x1]
      %v21 = vperm.slane %v19, 0
      %23 = vst [vmem:[#allocation2] sm:$0xff] %v21
    $region17: #{linear_w_activation.1} parent=1 // pred_fallthru
      _
    %v24 = vld [vmem:[#allocation2] sm:$0xff]
    %v25 = vld [vmem:[%s0] sm:$0xff]
    %v26 = vld [vmem:[%s1] sm:$0xff]
    %v27 = vld [vmem:[%s1 + $0x8] sm:$0xff]
    %v28 = vld [vmem:[%s1 + $0x10] sm:$0xff]
    %v29 = vld [vmem:[%s1 + $0x18] sm:$0xff]
    %v30 = vld [vmem:[%s1 + $0x20] sm:$0xff]
    %v31 = vld [vmem:[%s1 + $0x28] sm:$0xff]
    %v32 = vld [vmem:[%s1 + $0x30] sm:$0xff]
    %v33 = vld [vmem:[%s1 + $0x38] sm:$0xff]
    %v34 = vld [vmem:[%s1 + $0x40] sm:$0xff]
    %v35 = vld [vmem:[%s1 + $0x48] sm:$0xff]
    %v36 = vld [vmem:[%s1 + $0x50] sm:$0xff]
    %v37 = vld [vmem:[%s1 + $0x58] sm:$0xff]
    %v38 = vld [vmem:[%s1 + $0x60] sm:$0xff]
    %v39 = vld [vmem:[%s1 + $0x68] sm:$0xff]
    %v40 = vld [vmem:[%s1 + $0x70] sm:$0xff]
    %v41 = vld [vmem:[%s1 + $0x78] sm:$0xff]
    %42 = vmatpush.xpose.msra.mxu0 %v41
    %43 = vmatpush.xpose.msra.mxu0 %v40
    %44 = vmatpush.xpose.msra.mxu0 %v39
    %45 = vmatpush.xpose.msra.mxu0 %v38
    %46 = vmatpush.xpose.msra.mxu0 %v37
    %47 = vmatpush.xpose.msra.mxu0 %v36
    %48 = vmatpush.xpose.msra.mxu0 %v35
    %49 = vmatpush.xpose.msra.mxu0 %v34
    %50 = vmatpush.xpose.msra.mxu0 %v33
    %51 = vmatpush.xpose.msra.mxu0 %v32
    %52 = vmatpush.xpose.msra.mxu0 %v31
    %53 = vmatpush.xpose.msra.mxu0 %v30
    %54 = vmatpush.xpose.msra.mxu0 %v29
    %55 = vmatpush.xpose.msra.mxu0 %v28
    %56 = vmatpush.xpose.msra.mxu0 %v27
    %57 = vmatpush.xpose.msra.mxu0 %v26
    %58 = vmatmul.f32.gmra.mxu0 %v25
    %v59 = vpop.f32.mrf.mxu0
    %v60 = vadd.f32 0.0, %v59
    %61 = vdwg.mxu0
    %v62 = vadd.f32 %v24, %v60
    %63 = vst [vmem:[#allocation2] sm:$0xff] %v62
    // Predicated region
    $region18: #{linear_w_activation.1} parent=1 // pred_check
      %p64 = pneg %p15
    $region19: #{linear_w_activation.1} parent=1 // pred_check_branch
      %66 = sbr.rel (%p64) target = $region21
    $region20: #{linear_w_activation.1} parent=1 // pred_region
      %v67 = vld [vmem:[#allocation2] sm:$0xff]
      %v68 = vmax.f32 %v67, 0.0
      %69 = vst [vmem:[#allocation2] sm:$0xff] %v68
    $region21: #{linear_w_activation.1} parent=1 // pred_fallthru
      _
    // Predicated region
    $region22: #{linear_w_activation.1} parent=1 // pred_check
      _
    $region23: #{linear_w_activation.1} parent=1 // pred_check_branch
      %71 = sbr.rel (0) target = $region25
    $region24: #{linear_w_activation.1} parent=1 // pred_region
      %73 = vsyncadd [#allocation3], 0
      %s75 = sshll.u32 [#allocation2], 4
      %s76 = int_to_ptr.vmem [resolvable:$true] %s75
      %s77 = sshll.u32 %s3, 4
      %s78 = int_to_ptr.hbm [resolvable:$true] %s77
      %80 = dma.vmem_to_hbm [thread:$0]  %s76, 128, %s78, [#allocation3]
    $region25: #{linear_w_activation.1} parent=1 // pred_fallthru
      _
    // Predicated region
    $region26: #{linear_w_activation.1} parent=1 // pred_check
      _
    $region27: #{linear_w_activation.1} parent=1 // pred_check_branch
      %82 = sbr.rel (0) target = $region29
    $region28: #{linear_w_activation.1} parent=1 // pred_region
      %84 = dma.done [#allocation3], 128
    $region29: #{linear_w_activation.1} parent=1 // pred_fallthru
      _
    %85 = vsyncpa [#allocation3], 1

</llo_original>
